<compile_context>
chip_gen: v7x
topology: tpu7x:2x2x1
jax: 0.10.0
libtpu: 0.0.40
codegen_flags: <defaults>
</compile_context>

<pallas_src>
import functools

import jax
import jax.numpy as jnp
from jax.experimental import pallas as pl
from jax.experimental.pallas import tpu as pltpu

_LANES = 128
_VMEM_LIMIT = 32 * 1024 * 1024            # safe scoped-VMEM limit on v5e/v6e/v7x
_DEFAULT_BLOCK_BUDGET = 8 * 1024 * 1024   # target bytes for double-buffered blocks


def _round_up(x, m):
    return (x + m - 1) // m * m


def _largest_tile(hw_pad, max_lanes):
    """Largest multiple-of-128 divisor of hw_pad that is <= max_lanes (>=128)."""
    max_lanes = max(_LANES, min(max_lanes, hw_pad))
    if hw_pad <= max_lanes:
        return hw_pad
    best = _LANES
    t = 2 * _LANES
    while t <= max_lanes:
        if hw_pad % t == 0:
            best = t
        t += _LANES
    return best


def _se_scale_kernel(x_ref, w1_ref, b1_ref, w2_ref, b2_ref, y_ref, acc_ref, *, inv_hw):
    # x_ref: (N, C, HW_t)   w1: (Cmid, C)  b1: (1, Cmid)  w2: (C, Cmid)  b2: (1, C)
    # y_ref: (N, C) fp32 output; acc_ref: (N, C) fp32 scratch accumulator.
    hw = pl.program_id(0)
    part = jnp.sum(x_ref[...].astype(jnp.float32), axis=-1)          # (N, C) lane-reduce

    @pl.when(hw == 0)
    def _():
        acc_ref[...] = part

    @pl.when(hw > 0)
    def _():
        acc_ref[...] = acc_ref[...] + part

    @pl.when(hw == pl.num_programs(0) - 1)
    def _():
        pooled = acc_ref[...] * inv_hw                                 # global avg pool
        # 1x1 conv (C -> Cmid) + ReLU, on the VPU (no MXU for a tiny dot).
        h = jnp.sum(pooled[:, None, :] * w1_ref[...][None, :, :], axis=-1)   # (N, Cmid)
        h = jnp.maximum(h + b1_ref[...], 0.0)
        # 1x1 conv (Cmid -> C) + Sigmoid.
        logit = jnp.sum(h[:, None, :] * w2_ref[...][None, :, :], axis=-1)    # (N, C)
        y_ref[...] = jax.nn.sigmoid(logit + b2_ref[...])


def _scale_apply_kernel(x_ref, y_ref, o_ref):
    # x_ref, o_ref: (Nb, C, HW_t); y_ref: (Nb, C, 1) in the input dtype.
    o_ref[...] = x_ref[...] * y_ref[...]


def channel_attention(x_nchw, w1, b1, w2, b2, *,
                      block_budget_bytes=_DEFAULT_BLOCK_BUDGET):
    """SE channel attention: x * sigmoid(W2 @ relu(W1 @ avgpool(x) + b1) + b2).

    x_nchw: (N, C, H, W); w1: (Cmid, C); b1: (Cmid,); w2: (C, Cmid); b2: (C,).
    """
    N, C, H, W = x_nchw.shape
    Cmid = w1.shape[0]
    HW = H * W
    HW_pad = _round_up(HW, _LANES)
    dsize = jnp.dtype(x_nchw.dtype).itemsize

    x = x_nchw.reshape(N, C, HW)
    if HW_pad != HW:
        x = jnp.pad(x, ((0, 0), (0, 0), (0, HW_pad - HW)))

    # ---------- Phase 1: per-(N, C) SE scale (pool + MLP + sigmoid) ----------
    lanes_a = block_budget_bytes // (2 * N * C * dsize)     # x is double-buffered
    hw_t_a = _largest_tile(HW_pad, lanes_a)
    n_hw_a = HW_pad // hw_t_a

    scale = pl.pallas_call(
        functools.partial(_se_scale_kernel, inv_hw=1.0 / HW),
        out_shape=jax.ShapeDtypeStruct((N, C), jnp.float32),
        grid_spec=pltpu.PrefetchScalarGridSpec(
            num_scalar_prefetch=0,
            grid=(n_hw_a,),
            in_specs=[
                pl.BlockSpec((N, C, hw_t_a), lambda t: (0, 0, t)),
                pl.BlockSpec((Cmid, C), lambda t: (0, 0)),
                pl.BlockSpec((1, Cmid), lambda t: (0, 0)),
                pl.BlockSpec((C, Cmid), lambda t: (0, 0)),
                pl.BlockSpec((1, C), lambda t: (0, 0)),
            ],
            out_specs=pl.BlockSpec((N, C), lambda t: (0, 0)),
            scratch_shapes=[pltpu.VMEM((N, C), jnp.float32)],
        ),
        compiler_params=pltpu.CompilerParams(
            dimension_semantics=("arbitrary",),
            vmem_limit_bytes=_VMEM_LIMIT),
    )(x, w1, b1.reshape(1, Cmid), w2, b2.reshape(1, C))

    # Cast the tiny (N, C) scale once; the streaming multiply stays in x.dtype.
    y = scale.astype(x_nchw.dtype).reshape(N, C, 1)

    # ---------- Phase 2: o = x * y, streamed in lane-dense blocks ----------
    lanes_b = block_budget_bytes // (4 * C * dsize)         # x and o double-buffered
    hw_t_b = _largest_tile(HW_pad, lanes_b)
    n_hw_b = HW_pad // hw_t_b
    nb = 1
    if hw_t_b == HW_pad and N > 1:
        # Whole HW fits one tile: fold batch samples per block, but keep >=2
        # parallel grid steps so both v7x TensorCores can stream.
        target = max(1, N // 2)
        for cand in range(target, 0, -1):
            if N % cand == 0 and 4 * cand * C * hw_t_b * dsize <= block_budget_bytes:
                nb = cand
                break

    out = pl.pallas_call(
        _scale_apply_kernel,
        out_shape=jax.ShapeDtypeStruct((N, C, HW_pad), x_nchw.dtype),
        grid_spec=pltpu.PrefetchScalarGridSpec(
            num_scalar_prefetch=0,
            grid=(N // nb, n_hw_b),
            in_specs=[
                pl.BlockSpec((nb, C, hw_t_b), lambda n, t: (n, 0, t)),
                pl.BlockSpec((nb, C, 1), lambda n, t: (n, 0, 0)),
            ],
            out_specs=pl.BlockSpec((nb, C, hw_t_b), lambda n, t: (n, 0, t)),
        ),
        compiler_params=pltpu.CompilerParams(
            dimension_semantics=("parallel", "parallel"),
            vmem_limit_bytes=_VMEM_LIMIT),
    )(x, y)

    if HW_pad != HW:
        out = out[:, :, :HW]
    return out.reshape(N, C, H, W)


def channel_attention_ref(x, w1, b1, w2, b2):
    """Pure-JAX reference matching the PyTorch ChannelAttention forward."""
    pooled = jnp.mean(x.astype(jnp.float32), axis=(2, 3))    # (N, C)
    h = jnp.maximum(pooled @ w1.T + b1, 0.0)                 # (N, Cmid)
    y = jax.nn.sigmoid(h @ w2.T + b2)                        # (N, C)
    return x * y.astype(x.dtype)[:, :, None, None]


if __name__ == "__main__":
    key = jax.random.PRNGKey(0)

    def make_case(k, N, C, H, W, reduction):
        Cmid = max(1, C // reduction)
        kx, k1, k2, k3, k4 = jax.random.split(k, 5)
        x = jax.random.normal(kx, (N, C, H, W), dtype=jnp.float32)
        w1 = jax.random.normal(k1, (Cmid, C), dtype=jnp.float32) * 0.1
        b1 = jax.random.normal(k2, (Cmid,), dtype=jnp.float32) * 0.1
        w2 = jax.random.normal(k3, (C, Cmid), dtype=jnp.float32) * 0.1
        b2 = jax.random.normal(k4, (C,), dtype=jnp.float32) * 0.1
        return x, w1, b1, w2, b2

    ka, kb = jax.random.split(key)

    # Case 1: small shapes (num_feat=32, reduction=16, batch=2, 16x16 spatial);
    # whole HW fits one lane-dense tile (folded path).
    args = make_case(ka, 2, 32, 16, 16, 16)
    out = jax.block_until_ready(channel_attention(*args))
    ref = channel_attention_ref(*args)
    assert out.shape == args[0].shape
    assert jnp.allclose(out, ref, atol=1e-5, rtol=1e-5)

    # Case 2: force the tiled path (multiple HW tiles + non-multiple-of-128 spatial,
    # exercising padding) with a deliberately small per-block budget.
    args2 = make_case(kb, 1, 32, 20, 20, 16)
    out2 = jax.block_until_ready(
        channel_attention(*args2, block_budget_bytes=64 * 1024))
    ref2 = channel_attention_ref(*args2)
    assert out2.shape == args2[0].shape
    assert jnp.allclose(out2, ref2, atol=1e-5, rtol=1e-5)

    print("KERNEL_OK")
</pallas_src>

<mosaic_0001>
module attributes {stable_mosaic.version = 11 : i64} {
  func.func @_se_scale_kernel(%arg0: i32, %arg1: memref<2x32x256xf32, #tpu.memory_space<vmem>>, %arg2: memref<2x32xf32, #tpu.memory_space<vmem>>, %arg3: memref<1x2xf32, #tpu.memory_space<vmem>>, %arg4: memref<32x2xf32, #tpu.memory_space<vmem>>, %arg5: memref<1x32xf32, #tpu.memory_space<vmem>>, %arg6: memref<2x32xf32, #tpu.memory_space<vmem>>, %arg7: memref<2x32xf32, #tpu.memory_space<vmem>>) attributes {dimension_semantics = [#tpu.dimension_semantics<arbitrary>], iteration_bounds = array<i64: 1>, scalar_prefetch = 0 : i64, scratch_operands = 1 : i64, tpu.core_type = #tpu.core_type<tc>, window_params = [{transform_indices = @transform_0, window_bounds = array<i64: 2, 32, 256>}, {pipeline_mode = #tpu.pipeline_mode<synchronous>, transform_indices = @transform_1, window_bounds = array<i64: 2, 32>}, {pipeline_mode = #tpu.pipeline_mode<synchronous>, transform_indices = @transform_2, window_bounds = array<i64: 1, 2>}, {pipeline_mode = #tpu.pipeline_mode<synchronous>, transform_indices = @transform_3, window_bounds = array<i64: 32, 2>}, {pipeline_mode = #tpu.pipeline_mode<synchronous>, transform_indices = @transform_4, window_bounds = array<i64: 1, 32>}, {pipeline_mode = #tpu.pipeline_mode<synchronous>, transform_indices = @transform_5, window_bounds = array<i64: 2, 32>}]} {
    %c0 = arith.constant 0 : index
    %c0_0 = arith.constant 0 : index
    %c0_1 = arith.constant 0 : index
    %0 = vector.load %arg1[%c0, %c0_0, %c0_1] : memref<2x32x256xf32, #tpu.memory_space<vmem>>, vector<2x32x256xf32>
    %cst = arith.constant dense<0.000000e+00> : vector<2x32xf32>
    %1 = vector.multi_reduction <add>, %0, %cst [2] : vector<2x32x256xf32> to vector<2x32xf32>
    %c0_i32 = arith.constant 0 : i32
    %2 = arith.cmpi eq, %arg0, %c0_i32 : i32
    %3 = arith.extui %2 : i1 to i32
    %c0_i32_2 = arith.constant 0 : i32
    %4 = arith.cmpi ne, %3, %c0_i32_2 : i32
    scf.if %4 {
      %c0_7 = arith.constant 0 : index
      %c0_8 = arith.constant 0 : index
      %11 = vector.load %arg7[%c0_7, %c0_8] : memref<2x32xf32, #tpu.memory_space<vmem>>, vector<2x32xf32>
      tpu.vector_store %arg7[%c0_7, %c0_8], %1 {strides = array<i32>} : memref<2x32xf32, #tpu.memory_space<vmem>>, vector<2x32xf32>,
    } else {
    }
    %c0_i32_3 = arith.constant 0 : i32
    %5 = arith.cmpi sgt, %arg0, %c0_i32_3 : i32
    %6 = arith.extui %5 : i1 to i32
    %c0_i32_4 = arith.constant 0 : i32
    %7 = arith.cmpi ne, %6, %c0_i32_4 : i32
    scf.if %7 {
      %c0_7 = arith.constant 0 : index
      %c0_8 = arith.constant 0 : index
      %11 = vector.load %arg7[%c0_7, %c0_8] : memref<2x32xf32, #tpu.memory_space<vmem>>, vector<2x32xf32>
      %12 = arith.addf %11, %1 : vector<2x32xf32>
      %c0_9 = arith.constant 0 : index
      %c0_10 = arith.constant 0 : index
      %13 = vector.load %arg7[%c0_9, %c0_10] : memref<2x32xf32, #tpu.memory_space<vmem>>, vector<2x32xf32>
      tpu.vector_store %arg7[%c0_9, %c0_10], %12 {strides = array<i32>} : memref<2x32xf32, #tpu.memory_space<vmem>>, vector<2x32xf32>,
    } else {
    }
    %c0_i32_5 = arith.constant 0 : i32
    %8 = arith.cmpi eq, %arg0, %c0_i32_5 : i32
    %9 = arith.extui %8 : i1 to i32
    %c0_i32_6 = arith.constant 0 : i32
    %10 = arith.cmpi ne, %9, %c0_i32_6 : i32
    scf.if %10 {
      %c0_7 = arith.constant 0 : index
      %c0_8 = arith.constant 0 : index
      %11 = vector.load %arg7[%c0_7, %c0_8] : memref<2x32xf32, #tpu.memory_space<vmem>>, vector<2x32xf32>
      %cst_9 = arith.constant 3.906250e-03 : f32
      %12 = vector.broadcast %cst_9 : f32 to vector<2x32xf32>
      %13 = arith.mulf %11, %12 : vector<2x32xf32>
      %14 = vector.shape_cast %13 : vector<2x32xf32> to vector<2x1x32xf32>
      %c0_10 = arith.constant 0 : index
      %c0_11 = arith.constant 0 : index
      %15 = vector.load %arg2[%c0_10, %c0_11] : memref<2x32xf32, #tpu.memory_space<vmem>>, vector<2x32xf32>
      %16 = vector.shape_cast %15 : vector<2x32xf32> to vector<1x2x32xf32>
      %17 = vector.broadcast %14 : vector<2x1x32xf32> to vector<2x2x32xf32>
      %18 = vector.broadcast %16 : vector<1x2x32xf32> to vector<2x2x32xf32>
      %19 = arith.mulf %17, %18 : vector<2x2x32xf32>
      %cst_12 = arith.constant dense<0.000000e+00> : vector<2x2xf32>
      %20 = vector.multi_reduction <add>, %19, %cst_12 [2] : vector<2x2x32xf32> to vector<2x2xf32>
      %c0_13 = arith.constant 0 : index
      %c0_14 = arith.constant 0 : index
      %21 = vector.load %arg3[%c0_13, %c0_14] : memref<1x2xf32, #tpu.memory_space<vmem>>, vector<1x2xf32>
      %22 = vector.broadcast %21 : vector<1x2xf32> to vector<2x2xf32>
      %23 = arith.addf %20, %22 : vector<2x2xf32>
      %cst_15 = arith.constant 0.000000e+00 : f32
      %24 = vector.broadcast %cst_15 : f32 to vector<2x2xf32>
      %25 = arith.maximumf %23, %24 : vector<2x2xf32>
      %26 = vector.shape_cast %25 : vector<2x2xf32> to vector<2x1x2xf32>
      %c0_16 = arith.constant 0 : index
      %c0_17 = arith.constant 0 : index
      %27 = vector.load %arg4[%c0_16, %c0_17] : memref<32x2xf32, #tpu.memory_space<vmem>>, vector<32x2xf32>
      %28 = vector.shape_cast %27 : vector<32x2xf32> to vector<1x32x2xf32>
      %29 = vector.broadcast %26 : vector<2x1x2xf32> to vector<2x32x2xf32>
      %30 = vector.broadcast %28 : vector<1x32x2xf32> to vector<2x32x2xf32>
      %31 = arith.mulf %29, %30 : vector<2x32x2xf32>
      %cst_18 = arith.constant dense<0.000000e+00> : vector<2x32xf32>
      %32 = vector.multi_reduction <add>, %31, %cst_18 [2] : vector<2x32x2xf32> to vector<2x32xf32>
      %c0_19 = arith.constant 0 : index
      %c0_20 = arith.constant 0 : index
      %33 = vector.load %arg5[%c0_19, %c0_20] : memref<1x32xf32, #tpu.memory_space<vmem>>, vector<1x32xf32>
      %34 = vector.broadcast %33 : vector<1x32xf32> to vector<2x32xf32>
      %35 = arith.addf %32, %34 : vector<2x32xf32>
      %36 = arith.negf %35 : vector<2x32xf32>
      %37 = math.exp %36 : vector<2x32xf32>
      %cst_21 = arith.constant 1.000000e+00 : f32
      %38 = vector.broadcast %cst_21 : f32 to vector<2x32xf32>
      %39 = arith.addf %38, %37 : vector<2x32xf32>
      %40 = arith.divf %38, %39 : vector<2x32xf32>
      %c0_22 = arith.constant 0 : index
      %c0_23 = arith.constant 0 : index
      %41 = vector.load %arg6[%c0_22, %c0_23] : memref<2x32xf32, #tpu.memory_space<vmem>>, vector<2x32xf32>
      tpu.vector_store %arg6[%c0_22, %c0_23], %40 {strides = array<i32>} : memref<2x32xf32, #tpu.memory_space<vmem>>, vector<2x32xf32>,
    } else {
    }
    return
  }
  func.func @transform_0(%arg0: i32) -> (i32, i32, i32) {
    %c0_i32 = arith.constant 0 : i32
    %c0_i32_0 = arith.constant 0 : i32
    %c0_i32_1 = arith.constant 0 : i32
    return %c0_i32, %c0_i32_0, %arg0 : i32, i32, i32
  }
  func.func @transform_1(%arg0: i32) -> (i32, i32) {
    %c0_i32 = arith.constant 0 : i32
    %c0_i32_0 = arith.constant 0 : i32
    %c0_i32_1 = arith.constant 0 : i32
    return %c0_i32, %c0_i32_0 : i32, i32
  }
  func.func @transform_2(%arg0: i32) -> (i32, i32) {
    %c0_i32 = arith.constant 0 : i32
    %c0_i32_0 = arith.constant 0 : i32
    %c0_i32_1 = arith.constant 0 : i32
    return %c0_i32, %c0_i32_0 : i32, i32
  }
  func.func @transform_3(%arg0: i32) -> (i32, i32) {
    %c0_i32 = arith.constant 0 : i32
    %c0_i32_0 = arith.constant 0 : i32
    %c0_i32_1 = arith.constant 0 : i32
    return %c0_i32, %c0_i32_0 : i32, i32
  }
  func.func @transform_4(%arg0: i32) -> (i32, i32) {
    %c0_i32 = arith.constant 0 : i32
    %c0_i32_0 = arith.constant 0 : i32
    %c0_i32_1 = arith.constant 0 : i32
    return %c0_i32, %c0_i32_0 : i32, i32
  }
  func.func @transform_5(%arg0: i32) -> (i32, i32) {
    %c0_i32 = arith.constant 0 : i32
    %c0_i32_0 = arith.constant 0 : i32
    %c0_i32_1 = arith.constant 0 : i32
    return %c0_i32, %c0_i32_0 : i32, i32
  }
}

</mosaic_0001>

<llo_original>
// kernel: tpu_custom_call.1
$region0: #{tpu_custom_call.1}
  #allocation0 [shape = 'u32[]', space=smem, size = 0x4, offset = 0x4, fixed_abs, tag = 'smem constant byte address 0x4 - core index']
  #allocation1 [shape = 'u32[144,128]{1,0:T(1,128)}', space=vmem, size = 0x12000, scoped, tag = 'internal scratch']
  #allocation2 [shape = 'f32[2,32]{1,0:T(2,128)}', space=vmem, size = 0x400, scoped, tag = 'scratch operand']
  %s0 = inlined_call_operand.hbm [shape: f32[2,32,256], index: 0, kind: input, shape index: {}]
  %s1 = inlined_call_operand.vmem [shape: f32[2,32], index: 1, kind: input, shape index: {}]
  %s2 = inlined_call_operand.vmem [shape: f32[1,2], index: 2, kind: input, shape index: {}]
  %s3 = inlined_call_operand.vmem [shape: f32[32,2], index: 3, kind: input, shape index: {}]
  %s4 = inlined_call_operand.vmem [shape: f32[1,32], index: 4, kind: input, shape index: {}]
  %s5 = inlined_call_operand.hbm [shape: f32[2,32], index: 5, kind: output, shape index: {}]
  %s6 = sld [smem:[#allocation0]]
  $region46: #{tpu_custom_call.1} parent=0
    _
  %s8 = ssub.s32 1, %s6
  %s9 = scalar_select 0, %s8, %s6
  $region1: #{tpu_custom_call.1} parent=0
    #allocation3 [shape = 'u8[65536]{0}', space=vmem, size = 0x10000, scoped, tag = 'input window, operand 0, single buffered']
    #allocation4 [shape = 's32[1]{0}', space=sflag, size = 0x4, scoped, tag = 'scoped memory for tpu_custom_call.1']
    #allocation5 [shape = 's32[1]{0}', space=sflag, size = 0x4, scoped, tag = 'scoped memory for tpu_custom_call.1']
    #allocation6 [shape = 'u8[1024]{0}', space=vmem, size = 0x400, scoped, tag = 'output window, operand 0, single buffered']
    %10 = vsyncpa [#allocation4], 0
    %11 = vsyncpa [#allocation5], 0
    // Predicated region
    $region2: #{tpu_custom_call.1} parent=1 // pred_check
      _
    $region3: #{tpu_custom_call.1} parent=1 // pred_check_branch
      %13 = sbr.rel (0) target = $region5
    $region4: #{tpu_custom_call.1} parent=1 // pred_region
      %s15 = ssub.s32 2048, 2048
      %16 = vsyncadd [#allocation4], %s15
      %s17 = sshll.u32 [#allocation3], 4
      %s18 = int_to_ptr.vmem [resolvable:$true] %s17
      %23 = dma.hbm_to_vmem [thread:$0]  %s0, 2048, %s18, [#allocation4], 256, 256, 16
    $region5: #{tpu_custom_call.1} parent=1 // pred_fallthru
      _
    // Predicated region
    $region6: #{tpu_custom_call.1} parent=1 // pred_check
      _
    $region7: #{tpu_custom_call.1} parent=1 // pred_check_branch
      %25 = sbr.rel (0) target = $region9
    $region8: #{tpu_custom_call.1} parent=1 // pred_region
      _
    $region9: #{tpu_custom_call.1} parent=1 // pred_fallthru
      _
    // Predicated region
    $region10: #{tpu_custom_call.1} parent=1 // pred_check
      _
    $region11: #{tpu_custom_call.1} parent=1 // pred_check_branch
      %27 = sbr.rel (0) target = $region13
    $region12: #{tpu_custom_call.1} parent=1 // pred_region
      _
    $region13: #{tpu_custom_call.1} parent=1 // pred_fallthru
      _
    // Predicated region
    $region14: #{tpu_custom_call.1} parent=1 // pred_check
      _
    $region15: #{tpu_custom_call.1} parent=1 // pred_check_branch
      %29 = sbr.rel (0) target = $region17
    $region16: #{tpu_custom_call.1} parent=1 // pred_region
      _
    $region17: #{tpu_custom_call.1} parent=1 // pred_fallthru
      _
    // Predicated region
    $region18: #{tpu_custom_call.1} parent=1 // pred_check
      _
    $region19: #{tpu_custom_call.1} parent=1 // pred_check_branch
      %31 = sbr.rel (0) target = $region21
    $region20: #{tpu_custom_call.1} parent=1 // pred_region
      _
    $region21: #{tpu_custom_call.1} parent=1 // pred_fallthru
      _
    // Predicated region
    $region22: #{tpu_custom_call.1} parent=1 // pred_check
      _
    $region23: #{tpu_custom_call.1} parent=1 // pred_check_branch
      %33 = sbr.rel (0) target = $region25
    $region24: #{tpu_custom_call.1} parent=1 // pred_region
      %34 = dma.done [#allocation4], 2048
    $region25: #{tpu_custom_call.1} parent=1 // pred_fallthru
      _
    %v35 = vld [vmem:[#allocation3] sm:$0xff]
    %v36 = vld [vmem:[#allocation3 + $0x8] sm:$0xff]
    %v37 = vld [vmem:[#allocation3 + $0x10] sm:$0xff]
    %v38 = vld [vmem:[#allocation3 + $0x18] sm:$0xff]
    %v39 = vld [vmem:[#allocation3 + $0x20] sm:$0xff]
    %v40 = vld [vmem:[#allocation3 + $0x28] sm:$0xff]
    %v41 = vld [vmem:[#allocation3 + $0x30] sm:$0xff]
    %v42 = vld [vmem:[#allocation3 + $0x38] sm:$0xff]
    %v43 = vld [vmem:[#allocation3 + $0x40] sm:$0xff]
    %v44 = vld [vmem:[#allocation3 + $0x48] sm:$0xff]
    %v45 = vld [vmem:[#allocation3 + $0x50] sm:$0xff]
    %v46 = vld [vmem:[#allocation3 + $0x58] sm:$0xff]
    %v47 = vld [vmem:[#allocation3 + $0x60] sm:$0xff]
    %v48 = vld [vmem:[#allocation3 + $0x68] sm:$0xff]
    %v49 = vld [vmem:[#allocation3 + $0x70] sm:$0xff]
    %v50 = vld [vmem:[#allocation3 + $0x78] sm:$0xff]
    %v51 = vadd.f32 %v35, %v36
    %52 = vadd.xlane.f32.xlu0 %v51
    %v53 = vpop.xlane.xlu0 %52
    %v54 = vadd.f32 %v37, %v38
    %55 = vadd.xlane.f32.xlu0 %v54
    %v56 = vpop.xlane.xlu0 %55
    %v57 = vadd.f32 %v39, %v40
    %58 = vadd.xlane.f32.xlu0 %v57
    %v59 = vpop.xlane.xlu0 %58
    %v60 = vadd.f32 %v41, %v42
    %61 = vadd.xlane.f32.xlu0 %v60
    %v62 = vpop.xlane.xlu0 %61
    %v63 = vadd.f32 %v43, %v44
    %64 = vadd.xlane.f32.xlu0 %v63
    %v65 = vpop.xlane.xlu0 %64
    %v66 = vadd.f32 %v45, %v46
    %67 = vadd.xlane.f32.xlu0 %v66
    %v68 = vpop.xlane.xlu0 %67
    %v69 = vadd.f32 %v47, %v48
    %70 = vadd.xlane.f32.xlu0 %v69
    %v71 = vpop.xlane.xlu0 %70
    %v72 = vadd.f32 %v49, %v50
    %73 = vadd.xlane.f32.xlu0 %v72
    %v74 = vpop.xlane.xlu0 %73
    %p75 = scmp.eq.s32.totalorder 0, 0
    // Predicated region
    $region26: #{tpu_custom_call.1} parent=1 // pred_check
      %p76 = pneg %p75
    $region27: #{tpu_custom_call.1} parent=1 // pred_check_branch
      %78 = sbr.rel (%p76) target = $region29
    $region28: #{tpu_custom_call.1} parent=1 // pred_region
      %v87 = vlaneseq
      %v88 = vand.u32 %v87, 127
      %v89 = vlaneseq
      %v90 = vshrl.u32 %v89, 7
      %v91 = vsub.s32 %v88, %v90
      %v92 = vrot.slane %v53, %v91
      %v93 = vadd.s32 %v88, 4294967288
      %v94 = vlaneseq
      %v95 = vshrl.u32 %v94, 7
      %v96 = vsub.s32 %v93, %v95
      %v97 = vrot.slane %v56, %v96
      %vm98 = vcmask 130112
      %v99 = vsel %vm98, %v97, %v92
      %v100 = vadd.s32 %v88, 4294967280
      %v101 = vlaneseq
      %v102 = vshrl.u32 %v101, 7
      %v103 = vsub.s32 %v100, %v102
      %v104 = vrot.slane %v59, %v103
      %vm105 = vcmask 195712
      %v106 = vsel %vm105, %v104, %v99
      %v107 = vadd.s32 %v88, 4294967272
      %v108 = vlaneseq
      %v109 = vshrl.u32 %v108, 7
      %v110 = vsub.s32 %v107, %v109
      %v111 = vrot.slane %v62, %v110
      %vm112 = vcmask 261312
      %v113 = vsel %vm112, %v111, %v106
      %v114 = vlaneseq
      %v115 = vshrl.u32 %v114, 7
      %v116 = vsub.s32 %v88, %v115
      %v117 = vrot.slane %v65, %v116
      %v118 = vlaneseq
      %v119 = vshrl.u32 %v118, 7
      %v120 = vsub.s32 %v93, %v119
      %v121 = vrot.slane %v68, %v120
      %v122 = vsel %vm98, %v121, %v117
      %v123 = vlaneseq
      %v124 = vshrl.u32 %v123, 7
      %v125 = vsub.s32 %v100, %v124
      %v126 = vrot.slane %v71, %v125
      %v127 = vsel %vm105, %v126, %v122
      %v128 = vlaneseq
      %v129 = vshrl.u32 %v128, 7
      %v130 = vsub.s32 %v107, %v129
      %v131 = vrot.slane %v74, %v130
      %v132 = vsel %vm112, %v131, %v127
      %vm133 = vcmask 1041409
      %v134 = vsel %vm133, %v132, %v113
      %vm136 = vcmask 254976
      %137 = vst.msk [vmem:[#allocation2] sm:$0x3] %vm136, %v134
    $region29: #{tpu_custom_call.1} parent=1 // pred_fallthru
      _
    %p138 = scmp.gt.s32.totalorder 0, 0
    // Predicated region
    $region30: #{tpu_custom_call.1} parent=1 // pred_check
      %p139 = pneg %p138
    $region31: #{tpu_custom_call.1} parent=1 // pred_check_branch
      %141 = sbr.rel (%p139) target = $region33
    $region32: #{tpu_custom_call.1} parent=1 // pred_region
      %v142 = vld [vmem:[#allocation2] sm:$0x3]
      %v151 = vlaneseq
      %v152 = vand.u32 %v151, 127
      %v153 = vlaneseq
      %v154 = vshrl.u32 %v153, 7
      %v155 = vsub.s32 %v152, %v154
      %v156 = vrot.slane %v53, %v155
      %v157 = vadd.s32 %v152, 4294967288
      %v158 = vlaneseq
      %v159 = vshrl.u32 %v158, 7
      %v160 = vsub.s32 %v157, %v159
      %v161 = vrot.slane %v56, %v160
      %vm162 = vcmask 130112
      %v163 = vsel %vm162, %v161, %v156
      %v164 = vadd.s32 %v152, 4294967280
      %v165 = vlaneseq
      %v166 = vshrl.u32 %v165, 7
      %v167 = vsub.s32 %v164, %v166
      %v168 = vrot.slane %v59, %v167
      %vm169 = vcmask 195712
      %v170 = vsel %vm169, %v168, %v163
      %v171 = vadd.s32 %v152, 4294967272
      %v172 = vlaneseq
      %v173 = vshrl.u32 %v172, 7
      %v174 = vsub.s32 %v171, %v173
      %v175 = vrot.slane %v62, %v174
      %vm176 = vcmask 261312
      %v177 = vsel %vm176, %v175, %v170
      %v178 = vlaneseq
      %v179 = vshrl.u32 %v178, 7
      %v180 = vsub.s32 %v152, %v179
      %v181 = vrot.slane %v65, %v180
      %v182 = vlaneseq
      %v183 = vshrl.u32 %v182, 7
      %v184 = vsub.s32 %v157, %v183
      %v185 = vrot.slane %v68, %v184
      %v186 = vsel %vm162, %v185, %v181
      %v187 = vlaneseq
      %v188 = vshrl.u32 %v187, 7
      %v189 = vsub.s32 %v164, %v188
      %v190 = vrot.slane %v71, %v189
      %v191 = vsel %vm169, %v190, %v186
      %v192 = vlaneseq
      %v193 = vshrl.u32 %v192, 7
      %v194 = vsub.s32 %v171, %v193
      %v195 = vrot.slane %v74, %v194
      %v196 = vsel %vm176, %v195, %v191
      %vm197 = vcmask 1041409
      %v198 = vsel %vm197, %v196, %v177
      %v200 = vadd.f32 %v142, %v198
      %vm201 = vcmask 254976
      %202 = vst.msk [vmem:[#allocation2] sm:$0x3] %vm201, %v200
    $region33: #{tpu_custom_call.1} parent=1 // pred_fallthru
      _
    // Predicated region
    $region34: #{tpu_custom_call.1} parent=1 // pred_check
      %p203 = pneg %p75
    $region35: #{tpu_custom_call.1} parent=1 // pred_check_branch
      %205 = sbr.rel (%p203) target = $region37
    $region36: #{tpu_custom_call.1} parent=1 // pred_region
      %v206 = vld [vmem:[#allocation2] sm:$0x3]
      %v207 = vmul.f32 %v206, 0.00390625
      %v210 = vunpack.c.l.s4 1966171168
      %v211 = vunpack.c.0.s8 %v210
      %v212 = vlaneseq
      %v213 = vshrl.u32 %v212, 7
      %v214 = vsub.s32 %v211, %v213
      %v215 = vrot.slane %v207, %v214
      %v216 = vcombine.high %v215, %v215
      %v218 = vunpack.c.l.s4 1966171168
      %v219 = vunpack.c.0.s8 %v218
      %v220 = vlaneseq
      %v221 = vshrl.u32 %v220, 7
      %v222 = vsub.s32 %v219, %v221
      %v223 = vrot.slane %v215, %v222
      %v225 = vunpack.c.l.s4 1966171168
      %v226 = vunpack.c.0.s8 %v225
      %v227 = vlaneseq
      %v228 = vshrl.u32 %v227, 7
      %v229 = vsub.s32 %v226, %v228
      %v230 = vrot.slane %v216, %v229
      %v231 = vld [vmem:[%s1] sm:$0x3]
      %v232 = vlaneseq
      %v233 = vshrl.u32 %v232, 7
      %v234 = vsub.s32 0, %v233
      %v235 = vrot.slane %v223, %v234
      %v236 = vlaneseq
      %v237 = vshrl.u32 %v236, 7
      %v238 = vsub.s32 0, %v237
      %v239 = vrot.slane %v230, %v238
      %v242 = vmul.f32 %v235, %v231
      %v243 = vmul.f32 %v239, %v231
      %vm244 = vcmask 254976
      %v245 = vsel %vm244, %v242, 0.0
      %246 = vadd.xlane.f32.xlu0 %v245
      %v247 = vpop.xlane.xlu0 %246
      %v248 = vsel %vm244, %v243, 0.0
      %249 = vadd.xlane.f32.xlu0 %v248
      %v250 = vpop.xlane.xlu0 %249
      %v251 = vld [vmem:[%s2] sm:$0x1]
      %v253 = vlaneseq
      %v254 = vshrl.u32 %v253, 7
      %v255 = vsub.s32 0, %v254
      %v256 = vrot.slane %v251, %v255
      %258 = vbcast.lane.b32.xlu0 %v256, 256
      %v259 = vpop.permute.xlu0 %258
      %v261 = vadd.f32 %v247, %v259
      %v262 = vadd.f32 %v250, %v259
      %v263 = vmax.f32 %v261, 0.0
      %v264 = vmax.f32 %v262, 0.0
      %v265 = vld [vmem:[%s3] sm:$0xff]
      %v266 = vld [vmem:[%s3 + $0x8] sm:$0xff]
      %v267 = vld [vmem:[%s3 + $0x10] sm:$0xff]
      %v268 = vld [vmem:[%s3 + $0x18] sm:$0xff]
      %v273 = vlaneseq
      %v274 = vshrl.u32 %v273, 7
      %v275 = vsub.s32 0, %v274
      %v276 = vrot.slane %v265, %v275
      %278 = vbcast.lane.b32.xlu0 %v276, 256
      %v279 = vpop.permute.xlu0 %278
      %v280 = vlaneseq
      %v281 = vshrl.u32 %v280, 7
      %v282 = vsub.s32 1, %v281
      %v283 = vrot.slane %v265, %v282
      %285 = vbcast.lane.b32.xlu0 %v283, 256
      %v286 = vpop.permute.xlu0 %285
      %v287 = vlaneseq
      %v288 = vshrl.u32 %v287, 7
      %v289 = vsub.s32 2, %v288
      %v290 = vrot.slane %v265, %v289
      %292 = vbcast.lane.b32.xlu0 %v290, 256
      %v293 = vpop.permute.xlu0 %292
      %v294 = vlaneseq
      %v295 = vshrl.u32 %v294, 7
      %v296 = vsub.s32 3, %v295
      %v297 = vrot.slane %v265, %v296
      %299 = vbcast.lane.b32.xlu0 %v297, 256
      %v300 = vpop.permute.xlu0 %299
      %v301 = vlaneseq
      %v302 = vshrl.u32 %v301, 7
      %v303 = vsub.s32 4, %v302
      %v304 = vrot.slane %v265, %v303
      %306 = vbcast.lane.b32.xlu0 %v304, 256
      %v307 = vpop.permute.xlu0 %306
      %v308 = vlaneseq
      %v309 = vshrl.u32 %v308, 7
      %v310 = vsub.s32 5, %v309
      %v311 = vrot.slane %v265, %v310
      %313 = vbcast.lane.b32.xlu0 %v311, 256
      %v314 = vpop.permute.xlu0 %313
      %v315 = vlaneseq
      %v316 = vshrl.u32 %v315, 7
      %v317 = vsub.s32 6, %v316
      %v318 = vrot.slane %v265, %v317
      %320 = vbcast.lane.b32.xlu0 %v318, 256
      %v321 = vpop.permute.xlu0 %320
      %v322 = vlaneseq
      %v323 = vshrl.u32 %v322, 7
      %v324 = vsub.s32 7, %v323
      %v325 = vrot.slane %v265, %v324
      %327 = vbcast.lane.b32.xlu0 %v325, 256
      %v328 = vpop.permute.xlu0 %327
      %v329 = vlaneseq
      %v330 = vshrl.u32 %v329, 7
      %v331 = vsub.s32 0, %v330
      %v332 = vrot.slane %v266, %v331
      %334 = vbcast.lane.b32.xlu0 %v332, 256
      %v335 = vpop.permute.xlu0 %334
      %v336 = vlaneseq
      %v337 = vshrl.u32 %v336, 7
      %v338 = vsub.s32 1, %v337
      %v339 = vrot.slane %v266, %v338
      %341 = vbcast.lane.b32.xlu0 %v339, 256
      %v342 = vpop.permute.xlu0 %341
      %v343 = vlaneseq
      %v344 = vshrl.u32 %v343, 7
      %v345 = vsub.s32 2, %v344
      %v346 = vrot.slane %v266, %v345
      %348 = vbcast.lane.b32.xlu0 %v346, 256
      %v349 = vpop.permute.xlu0 %348
      %v350 = vlaneseq
      %v351 = vshrl.u32 %v350, 7
      %v352 = vsub.s32 3, %v351
      %v353 = vrot.slane %v266, %v352
      %355 = vbcast.lane.b32.xlu0 %v353, 256
      %v356 = vpop.permute.xlu0 %355
      %v357 = vlaneseq
      %v358 = vshrl.u32 %v357, 7
      %v359 = vsub.s32 4, %v358
      %v360 = vrot.slane %v266, %v359
      %362 = vbcast.lane.b32.xlu0 %v360, 256
      %v363 = vpop.permute.xlu0 %362
      %v364 = vlaneseq
      %v365 = vshrl.u32 %v364, 7
      %v366 = vsub.s32 5, %v365
      %v367 = vrot.slane %v266, %v366
      %369 = vbcast.lane.b32.xlu0 %v367, 256
      %v370 = vpop.permute.xlu0 %369
      %v371 = vlaneseq
      %v372 = vshrl.u32 %v371, 7
      %v373 = vsub.s32 6, %v372
      %v374 = vrot.slane %v266, %v373
      %376 = vbcast.lane.b32.xlu0 %v374, 256
      %v377 = vpop.permute.xlu0 %376
      %v378 = vlaneseq
      %v379 = vshrl.u32 %v378, 7
      %v380 = vsub.s32 7, %v379
      %v381 = vrot.slane %v266, %v380
      %383 = vbcast.lane.b32.xlu0 %v381, 256
      %v384 = vpop.permute.xlu0 %383
      %v385 = vlaneseq
      %v386 = vshrl.u32 %v385, 7
      %v387 = vsub.s32 0, %v386
      %v388 = vrot.slane %v267, %v387
      %390 = vbcast.lane.b32.xlu0 %v388, 256
      %v391 = vpop.permute.xlu0 %390
      %v392 = vlaneseq
      %v393 = vshrl.u32 %v392, 7
      %v394 = vsub.s32 1, %v393
      %v395 = vrot.slane %v267, %v394
      %397 = vbcast.lane.b32.xlu0 %v395, 256
      %v398 = vpop.permute.xlu0 %397
      %v399 = vlaneseq
      %v400 = vshrl.u32 %v399, 7
      %v401 = vsub.s32 2, %v400
      %v402 = vrot.slane %v267, %v401
      %404 = vbcast.lane.b32.xlu0 %v402, 256
      %v405 = vpop.permute.xlu0 %404
      %v406 = vlaneseq
      %v407 = vshrl.u32 %v406, 7
      %v408 = vsub.s32 3, %v407
      %v409 = vrot.slane %v267, %v408
      %411 = vbcast.lane.b32.xlu0 %v409, 256
      %v412 = vpop.permute.xlu0 %411
      %v413 = vlaneseq
      %v414 = vshrl.u32 %v413, 7
      %v415 = vsub.s32 4, %v414
      %v416 = vrot.slane %v267, %v415
      %418 = vbcast.lane.b32.xlu0 %v416, 256
      %v419 = vpop.permute.xlu0 %418
      %v420 = vlaneseq
      %v421 = vshrl.u32 %v420, 7
      %v422 = vsub.s32 5, %v421
      %v423 = vrot.slane %v267, %v422
      %425 = vbcast.lane.b32.xlu0 %v423, 256
      %v426 = vpop.permute.xlu0 %425
      %v427 = vlaneseq
      %v428 = vshrl.u32 %v427, 7
      %v429 = vsub.s32 6, %v428
      %v430 = vrot.slane %v267, %v429
      %432 = vbcast.lane.b32.xlu0 %v430, 256
      %v433 = vpop.permute.xlu0 %432
      %v434 = vlaneseq
      %v435 = vshrl.u32 %v434, 7
      %v436 = vsub.s32 7, %v435
      %v437 = vrot.slane %v267, %v436
      %439 = vbcast.lane.b32.xlu0 %v437, 256
      %v440 = vpop.permute.xlu0 %439
      %v441 = vlaneseq
      %v442 = vshrl.u32 %v441, 7
      %v443 = vsub.s32 0, %v442
      %v444 = vrot.slane %v268, %v443
      %446 = vbcast.lane.b32.xlu0 %v444, 256
      %v447 = vpop.permute.xlu0 %446
      %v448 = vlaneseq
      %v449 = vshrl.u32 %v448, 7
      %v450 = vsub.s32 1, %v449
      %v451 = vrot.slane %v268, %v450
      %453 = vbcast.lane.b32.xlu0 %v451, 256
      %v454 = vpop.permute.xlu0 %453
      %v455 = vlaneseq
      %v456 = vshrl.u32 %v455, 7
      %v457 = vsub.s32 2, %v456
      %v458 = vrot.slane %v268, %v457
      %460 = vbcast.lane.b32.xlu0 %v458, 256
      %v461 = vpop.permute.xlu0 %460
      %v462 = vlaneseq
      %v463 = vshrl.u32 %v462, 7
      %v464 = vsub.s32 3, %v463
      %v465 = vrot.slane %v268, %v464
      %467 = vbcast.lane.b32.xlu0 %v465, 256
      %v468 = vpop.permute.xlu0 %467
      %v469 = vlaneseq
      %v470 = vshrl.u32 %v469, 7
      %v471 = vsub.s32 4, %v470
      %v472 = vrot.slane %v268, %v471
      %474 = vbcast.lane.b32.xlu0 %v472, 256
      %v475 = vpop.permute.xlu0 %474
      %v476 = vlaneseq
      %v477 = vshrl.u32 %v476, 7
      %v478 = vsub.s32 5, %v477
      %v479 = vrot.slane %v268, %v478
      %481 = vbcast.lane.b32.xlu0 %v479, 256
      %v482 = vpop.permute.xlu0 %481
      %v483 = vlaneseq
      %v484 = vshrl.u32 %v483, 7
      %v485 = vsub.s32 6, %v484
      %v486 = vrot.slane %v268, %v485
      %488 = vbcast.lane.b32.xlu0 %v486, 256
      %v489 = vpop.permute.xlu0 %488
      %v490 = vlaneseq
      %v491 = vshrl.u32 %v490, 7
      %v492 = vsub.s32 7, %v491
      %v493 = vrot.slane %v268, %v492
      %495 = vbcast.lane.b32.xlu0 %v493, 256
      %v496 = vpop.permute.xlu0 %495
      %v529 = vmul.f32 %v263, %v279
      %v530 = vmul.f32 %v263, %v286
      %v531 = vmul.f32 %v263, %v293
      %v532 = vmul.f32 %v263, %v300
      %v533 = vmul.f32 %v263, %v307
      %v534 = vmul.f32 %v263, %v314
      %v535 = vmul.f32 %v263, %v321
      %v536 = vmul.f32 %v263, %v328
      %v537 = vmul.f32 %v263, %v335
      %v538 = vmul.f32 %v263, %v342
      %v539 = vmul.f32 %v263, %v349
      %v540 = vmul.f32 %v263, %v356
      %v541 = vmul.f32 %v263, %v363
      %v542 = vmul.f32 %v263, %v370
      %v543 = vmul.f32 %v263, %v377
      %v544 = vmul.f32 %v263, %v384
      %v545 = vmul.f32 %v263, %v391
      %v546 = vmul.f32 %v263, %v398
      %v547 = vmul.f32 %v263, %v405
      %v548 = vmul.f32 %v263, %v412
      %v549 = vmul.f32 %v263, %v419
      %v550 = vmul.f32 %v263, %v426
      %v551 = vmul.f32 %v263, %v433
      %v552 = vmul.f32 %v263, %v440
      %v553 = vmul.f32 %v263, %v447
      %v554 = vmul.f32 %v263, %v454
      %v555 = vmul.f32 %v263, %v461
      %v556 = vmul.f32 %v263, %v468
      %v557 = vmul.f32 %v263, %v475
      %v558 = vmul.f32 %v263, %v482
      %v559 = vmul.f32 %v263, %v489
      %v560 = vmul.f32 %v263, %v496
      %v561 = vmul.f32 %v264, %v279
      %v562 = vmul.f32 %v264, %v286
      %v563 = vmul.f32 %v264, %v293
      %v564 = vmul.f32 %v264, %v300
      %v565 = vmul.f32 %v264, %v307
      %v566 = vmul.f32 %v264, %v314
      %v567 = vmul.f32 %v264, %v321
      %v568 = vmul.f32 %v264, %v328
      %v569 = vmul.f32 %v264, %v335
      %v570 = vmul.f32 %v264, %v342
      %v571 = vmul.f32 %v264, %v349
      %v572 = vmul.f32 %v264, %v356
      %v573 = vmul.f32 %v264, %v363
      %v574 = vmul.f32 %v264, %v370
      %v575 = vmul.f32 %v264, %v377
      %v576 = vmul.f32 %v264, %v384
      %v577 = vmul.f32 %v264, %v391
      %v578 = vmul.f32 %v264, %v398
      %v579 = vmul.f32 %v264, %v405
      %v580 = vmul.f32 %v264, %v412
      %v581 = vmul.f32 %v264, %v419
      %v582 = vmul.f32 %v264, %v426
      %v583 = vmul.f32 %v264, %v433
      %v584 = vmul.f32 %v264, %v440
      %v585 = vmul.f32 %v264, %v447
      %v586 = vmul.f32 %v264, %v454
      %v587 = vmul.f32 %v264, %v461
      %v588 = vmul.f32 %v264, %v468
      %v589 = vmul.f32 %v264, %v475
      %v590 = vmul.f32 %v264, %v482
      %v591 = vmul.f32 %v264, %v489
      %v592 = vmul.f32 %v264, %v496
      %657 = vset.pattern.permute.xlu0 0
      %658 = vperm.xlu0 %657, %v529
      %v659 = vpop.permute.xlu0 %658
      %660 = vset.pattern.permute.xlu0 0
      %661 = vperm.xlu0 %660, %v530
      %v662 = vpop.permute.xlu0 %661
      %663 = vset.pattern.permute.xlu0 0
      %664 = vperm.xlu0 %663, %v531
      %v665 = vpop.permute.xlu0 %664
      %666 = vset.pattern.permute.xlu0 0
      %667 = vperm.xlu0 %666, %v532
      %v668 = vpop.permute.xlu0 %667
      %669 = vset.pattern.permute.xlu0 0
      %670 = vperm.xlu0 %669, %v533
      %v671 = vpop.permute.xlu0 %670
      %672 = vset.pattern.permute.xlu0 0
      %673 = vperm.xlu0 %672, %v534
      %v674 = vpop.permute.xlu0 %673
      %675 = vset.pattern.permute.xlu0 0
      %676 = vperm.xlu0 %675, %v535
      %v677 = vpop.permute.xlu0 %676
      %678 = vset.pattern.permute.xlu0 0
      %679 = vperm.xlu0 %678, %v536
      %v680 = vpop.permute.xlu0 %679
      %681 = vset.pattern.permute.xlu0 0
      %682 = vperm.xlu0 %681, %v537
      %v683 = vpop.permute.xlu0 %682
      %684 = vset.pattern.permute.xlu0 0
      %685 = vperm.xlu0 %684, %v538
      %v686 = vpop.permute.xlu0 %685
      %687 = vset.pattern.permute.xlu0 0
      %688 = vperm.xlu0 %687, %v539
      %v689 = vpop.permute.xlu0 %688
      %690 = vset.pattern.permute.xlu0 0
      %691 = vperm.xlu0 %690, %v540
      %v692 = vpop.permute.xlu0 %691
      %693 = vset.pattern.permute.xlu0 0
      %694 = vperm.xlu0 %693, %v541
      %v695 = vpop.permute.xlu0 %694
      %696 = vset.pattern.permute.xlu0 0
      %697 = vperm.xlu0 %696, %v542
      %v698 = vpop.permute.xlu0 %697
      %699 = vset.pattern.permute.xlu0 0
      %700 = vperm.xlu0 %699, %v543
      %v701 = vpop.permute.xlu0 %700
      %702 = vset.pattern.permute.xlu0 0
      %703 = vperm.xlu0 %702, %v544
      %v704 = vpop.permute.xlu0 %703
      %705 = vset.pattern.permute.xlu0 0
      %706 = vperm.xlu0 %705, %v545
      %v707 = vpop.permute.xlu0 %706
      %708 = vset.pattern.permute.xlu0 0
      %709 = vperm.xlu0 %708, %v546
      %v710 = vpop.permute.xlu0 %709
      %711 = vset.pattern.permute.xlu0 0
      %712 = vperm.xlu0 %711, %v547
      %v713 = vpop.permute.xlu0 %712
      %714 = vset.pattern.permute.xlu0 0
      %715 = vperm.xlu0 %714, %v548
      %v716 = vpop.permute.xlu0 %715
      %717 = vset.pattern.permute.xlu0 0
      %718 = vperm.xlu0 %717, %v549
      %v719 = vpop.permute.xlu0 %718
      %720 = vset.pattern.permute.xlu0 0
      %721 = vperm.xlu0 %720, %v550
      %v722 = vpop.permute.xlu0 %721
      %723 = vset.pattern.permute.xlu0 0
      %724 = vperm.xlu0 %723, %v551
      %v725 = vpop.permute.xlu0 %724
      %726 = vset.pattern.permute.xlu0 0
      %727 = vperm.xlu0 %726, %v552
      %v728 = vpop.permute.xlu0 %727
      %729 = vset.pattern.permute.xlu0 0
      %730 = vperm.xlu0 %729, %v553
      %v731 = vpop.permute.xlu0 %730
      %732 = vset.pattern.permute.xlu0 0
      %733 = vperm.xlu0 %732, %v554
      %v734 = vpop.permute.xlu0 %733
      %735 = vset.pattern.permute.xlu0 0
      %736 = vperm.xlu0 %735, %v555
      %v737 = vpop.permute.xlu0 %736
      %738 = vset.pattern.permute.xlu0 0
      %739 = vperm.xlu0 %738, %v556
      %v740 = vpop.permute.xlu0 %739
      %741 = vset.pattern.permute.xlu0 0
      %742 = vperm.xlu0 %741, %v557
      %v743 = vpop.permute.xlu0 %742
      %744 = vset.pattern.permute.xlu0 0
      %745 = vperm.xlu0 %744, %v558
      %v746 = vpop.permute.xlu0 %745
      %747 = vset.pattern.permute.xlu0 0
      %748 = vperm.xlu0 %747, %v559
      %v749 = vpop.permute.xlu0 %748
      %750 = vset.pattern.permute.xlu0 0
      %751 = vperm.xlu0 %750, %v560
      %v752 = vpop.permute.xlu0 %751
      %753 = vset.pattern.permute.xlu0 0
      %754 = vperm.xlu0 %753, %v561
      %v755 = vpop.permute.xlu0 %754
      %756 = vset.pattern.permute.xlu0 0
      %757 = vperm.xlu0 %756, %v562
      %v758 = vpop.permute.xlu0 %757
      %759 = vset.pattern.permute.xlu0 0
      %760 = vperm.xlu0 %759, %v563
      %v761 = vpop.permute.xlu0 %760
      %762 = vset.pattern.permute.xlu0 0
      %763 = vperm.xlu0 %762, %v564
      %v764 = vpop.permute.xlu0 %763
      %765 = vset.pattern.permute.xlu0 0
      %766 = vperm.xlu0 %765, %v565
      %v767 = vpop.permute.xlu0 %766
      %768 = vset.pattern.permute.xlu0 0
      %769 = vperm.xlu0 %768, %v566
      %v770 = vpop.permute.xlu0 %769
      %771 = vset.pattern.permute.xlu0 0
      %772 = vperm.xlu0 %771, %v567
      %v773 = vpop.permute.xlu0 %772
      %774 = vset.pattern.permute.xlu0 0
      %775 = vperm.xlu0 %774, %v568
      %v776 = vpop.permute.xlu0 %775
      %777 = vset.pattern.permute.xlu0 0
      %778 = vperm.xlu0 %777, %v569
      %v779 = vpop.permute.xlu0 %778
      %780 = vset.pattern.permute.xlu0 0
      %781 = vperm.xlu0 %780, %v570
      %v782 = vpop.permute.xlu0 %781
      %783 = vset.pattern.permute.xlu0 0
      %784 = vperm.xlu0 %783, %v571
      %v785 = vpop.permute.xlu0 %784
      %786 = vset.pattern.permute.xlu0 0
      %787 = vperm.xlu0 %786, %v572
      %v788 = vpop.permute.xlu0 %787
      %789 = vset.pattern.permute.xlu0 0
      %790 = vperm.xlu0 %789, %v573
      %v791 = vpop.permute.xlu0 %790
      %792 = vset.pattern.permute.xlu0 0
      %793 = vperm.xlu0 %792, %v574
      %v794 = vpop.permute.xlu0 %793
      %795 = vset.pattern.permute.xlu0 0
      %796 = vperm.xlu0 %795, %v575
      %v797 = vpop.permute.xlu0 %796
      %798 = vset.pattern.permute.xlu0 0
      %799 = vperm.xlu0 %798, %v576
      %v800 = vpop.permute.xlu0 %799
      %801 = vset.pattern.permute.xlu0 0
      %802 = vperm.xlu0 %801, %v577
      %v803 = vpop.permute.xlu0 %802
      %804 = vset.pattern.permute.xlu0 0
      %805 = vperm.xlu0 %804, %v578
      %v806 = vpop.permute.xlu0 %805
      %807 = vset.pattern.permute.xlu0 0
      %808 = vperm.xlu0 %807, %v579
      %v809 = vpop.permute.xlu0 %808
      %810 = vset.pattern.permute.xlu0 0
      %811 = vperm.xlu0 %810, %v580
      %v812 = vpop.permute.xlu0 %811
      %813 = vset.pattern.permute.xlu0 0
      %814 = vperm.xlu0 %813, %v581
      %v815 = vpop.permute.xlu0 %814
      %816 = vset.pattern.permute.xlu0 0
      %817 = vperm.xlu0 %816, %v582
      %v818 = vpop.permute.xlu0 %817
      %819 = vset.pattern.permute.xlu0 0
      %820 = vperm.xlu0 %819, %v583
      %v821 = vpop.permute.xlu0 %820
      %822 = vset.pattern.permute.xlu0 0
      %823 = vperm.xlu0 %822, %v584
      %v824 = vpop.permute.xlu0 %823
      %825 = vset.pattern.permute.xlu0 0
      %826 = vperm.xlu0 %825, %v585
      %v827 = vpop.permute.xlu0 %826
      %828 = vset.pattern.permute.xlu0 0
      %829 = vperm.xlu0 %828, %v586
      %v830 = vpop.permute.xlu0 %829
      %831 = vset.pattern.permute.xlu0 0
      %832 = vperm.xlu0 %831, %v587
      %v833 = vpop.permute.xlu0 %832
      %834 = vset.pattern.permute.xlu0 0
      %835 = vperm.xlu0 %834, %v588
      %v836 = vpop.permute.xlu0 %835
      %837 = vset.pattern.permute.xlu0 0
      %838 = vperm.xlu0 %837, %v589
      %v839 = vpop.permute.xlu0 %838
      %840 = vset.pattern.permute.xlu0 0
      %841 = vperm.xlu0 %840, %v590
      %v842 = vpop.permute.xlu0 %841
      %843 = vset.pattern.permute.xlu0 0
      %844 = vperm.xlu0 %843, %v591
      %v845 = vpop.permute.xlu0 %844
      %846 = vset.pattern.permute.xlu0 0
      %847 = vperm.xlu0 %846, %v592
      %v848 = vpop.permute.xlu0 %847
      %v849 = vlaneseq
      %v850 = vand.u32 %v849, 127
      %v851 = vlaneseq
      %v852 = vshrl.u32 %v851, 7
      %v853 = vsub.s32 %v850, %v852
      %v854 = vrot.slane %v659, %v853
      %v855 = vlaneseq
      %v856 = vshrl.u32 %v855, 7
      %v857 = vsub.s32 %v850, %v856
      %v858 = vrot.slane %v662, %v857
      %v859 = vlaneseq
      %v860 = vshrl.u32 %v859, 7
      %v861 = vsub.s32 %v850, %v860
      %v862 = vrot.slane %v665, %v861
      %v863 = vlaneseq
      %v864 = vshrl.u32 %v863, 7
      %v865 = vsub.s32 %v850, %v864
      %v866 = vrot.slane %v668, %v865
      %v867 = vlaneseq
      %v868 = vshrl.u32 %v867, 7
      %v869 = vsub.s32 %v850, %v868
      %v870 = vrot.slane %v671, %v869
      %v871 = vlaneseq
      %v872 = vshrl.u32 %v871, 7
      %v873 = vsub.s32 %v850, %v872
      %v874 = vrot.slane %v674, %v873
      %v875 = vlaneseq
      %v876 = vshrl.u32 %v875, 7
      %v877 = vsub.s32 %v850, %v876
      %v878 = vrot.slane %v677, %v877
      %v879 = vlaneseq
      %v880 = vshrl.u32 %v879, 7
      %v881 = vsub.s32 %v850, %v880
      %v882 = vrot.slane %v680, %v881
      %v883 = vlaneseq
      %v884 = vshrl.u32 %v883, 7
      %v885 = vsub.s32 %v850, %v884
      %v886 = vrot.slane %v683, %v885
      %v887 = vlaneseq
      %v888 = vshrl.u32 %v887, 7
      %v889 = vsub.s32 %v850, %v888
      %v890 = vrot.slane %v686, %v889
      %v891 = vlaneseq
      %v892 = vshrl.u32 %v891, 7
      %v893 = vsub.s32 %v850, %v892
      %v894 = vrot.slane %v689, %v893
      %v895 = vlaneseq
      %v896 = vshrl.u32 %v895, 7
      %v897 = vsub.s32 %v850, %v896
      %v898 = vrot.slane %v692, %v897
      %v899 = vlaneseq
      %v900 = vshrl.u32 %v899, 7
      %v901 = vsub.s32 %v850, %v900
      %v902 = vrot.slane %v695, %v901
      %v903 = vlaneseq
      %v904 = vshrl.u32 %v903, 7
      %v905 = vsub.s32 %v850, %v904
      %v906 = vrot.slane %v698, %v905
      %v907 = vlaneseq
      %v908 = vshrl.u32 %v907, 7
      %v909 = vsub.s32 %v850, %v908
      %v910 = vrot.slane %v701, %v909
      %v911 = vlaneseq
      %v912 = vshrl.u32 %v911, 7
      %v913 = vsub.s32 %v850, %v912
      %v914 = vrot.slane %v704, %v913
      %v915 = vlaneseq
      %v916 = vshrl.u32 %v915, 7
      %v917 = vsub.s32 %v850, %v916
      %v918 = vrot.slane %v707, %v917
      %v919 = vlaneseq
      %v920 = vshrl.u32 %v919, 7
      %v921 = vsub.s32 %v850, %v920
      %v922 = vrot.slane %v710, %v921
      %v923 = vlaneseq
      %v924 = vshrl.u32 %v923, 7
      %v925 = vsub.s32 %v850, %v924
      %v926 = vrot.slane %v713, %v925
      %v927 = vlaneseq
      %v928 = vshrl.u32 %v927, 7
      %v929 = vsub.s32 %v850, %v928
      %v930 = vrot.slane %v716, %v929
      %v931 = vlaneseq
      %v932 = vshrl.u32 %v931, 7
      %v933 = vsub.s32 %v850, %v932
      %v934 = vrot.slane %v719, %v933
      %v935 = vlaneseq
      %v936 = vshrl.u32 %v935, 7
      %v937 = vsub.s32 %v850, %v936
      %v938 = vrot.slane %v722, %v937
      %v939 = vlaneseq
      %v940 = vshrl.u32 %v939, 7
      %v941 = vsub.s32 %v850, %v940
      %v942 = vrot.slane %v725, %v941
      %v943 = vlaneseq
      %v944 = vshrl.u32 %v943, 7
      %v945 = vsub.s32 %v850, %v944
      %v946 = vrot.slane %v728, %v945
      %v947 = vlaneseq
      %v948 = vshrl.u32 %v947, 7
      %v949 = vsub.s32 %v850, %v948
      %v950 = vrot.slane %v731, %v949
      %v951 = vlaneseq
      %v952 = vshrl.u32 %v951, 7
      %v953 = vsub.s32 %v850, %v952
      %v954 = vrot.slane %v734, %v953
      %v955 = vlaneseq
      %v956 = vshrl.u32 %v955, 7
      %v957 = vsub.s32 %v850, %v956
      %v958 = vrot.slane %v737, %v957
      %v959 = vlaneseq
      %v960 = vshrl.u32 %v959, 7
      %v961 = vsub.s32 %v850, %v960
      %v962 = vrot.slane %v740, %v961
      %v963 = vlaneseq
      %v964 = vshrl.u32 %v963, 7
      %v965 = vsub.s32 %v850, %v964
      %v966 = vrot.slane %v743, %v965
      %v967 = vlaneseq
      %v968 = vshrl.u32 %v967, 7
      %v969 = vsub.s32 %v850, %v968
      %v970 = vrot.slane %v746, %v969
      %v971 = vlaneseq
      %v972 = vshrl.u32 %v971, 7
      %v973 = vsub.s32 %v850, %v972
      %v974 = vrot.slane %v749, %v973
      %v975 = vlaneseq
      %v976 = vshrl.u32 %v975, 7
      %v977 = vsub.s32 %v850, %v976
      %v978 = vrot.slane %v752, %v977
      %v979 = vlaneseq
      %v980 = vshrl.u32 %v979, 7
      %v981 = vsub.s32 %v850, %v980
      %v982 = vrot.slane %v755, %v981
      %v983 = vlaneseq
      %v984 = vshrl.u32 %v983, 7
      %v985 = vsub.s32 %v850, %v984
      %v986 = vrot.slane %v758, %v985
      %v987 = vlaneseq
      %v988 = vshrl.u32 %v987, 7
      %v989 = vsub.s32 %v850, %v988
      %v990 = vrot.slane %v761, %v989
      %v991 = vlaneseq
      %v992 = vshrl.u32 %v991, 7
      %v993 = vsub.s32 %v850, %v992
      %v994 = vrot.slane %v764, %v993
      %v995 = vlaneseq
      %v996 = vshrl.u32 %v995, 7
      %v997 = vsub.s32 %v850, %v996
      %v998 = vrot.slane %v767, %v997
      %v999 = vlaneseq
      %v1000 = vshrl.u32 %v999, 7
      %v1001 = vsub.s32 %v850, %v1000
      %v1002 = vrot.slane %v770, %v1001
      %v1003 = vlaneseq
      %v1004 = vshrl.u32 %v1003, 7
      %v1005 = vsub.s32 %v850, %v1004
      %v1006 = vrot.slane %v773, %v1005
      %v1007 = vlaneseq
      %v1008 = vshrl.u32 %v1007, 7
      %v1009 = vsub.s32 %v850, %v1008
      %v1010 = vrot.slane %v776, %v1009
      %v1011 = vlaneseq
      %v1012 = vshrl.u32 %v1011, 7
      %v1013 = vsub.s32 %v850, %v1012
      %v1014 = vrot.slane %v779, %v1013
      %v1015 = vlaneseq
      %v1016 = vshrl.u32 %v1015, 7
      %v1017 = vsub.s32 %v850, %v1016
      %v1018 = vrot.slane %v782, %v1017
      %v1019 = vlaneseq
      %v1020 = vshrl.u32 %v1019, 7
      %v1021 = vsub.s32 %v850, %v1020
      %v1022 = vrot.slane %v785, %v1021
      %v1023 = vlaneseq
      %v1024 = vshrl.u32 %v1023, 7
      %v1025 = vsub.s32 %v850, %v1024
      %v1026 = vrot.slane %v788, %v1025
      %v1027 = vlaneseq
      %v1028 = vshrl.u32 %v1027, 7
      %v1029 = vsub.s32 %v850, %v1028
      %v1030 = vrot.slane %v791, %v1029
      %v1031 = vlaneseq
      %v1032 = vshrl.u32 %v1031, 7
      %v1033 = vsub.s32 %v850, %v1032
      %v1034 = vrot.slane %v794, %v1033
      %v1035 = vlaneseq
      %v1036 = vshrl.u32 %v1035, 7
      %v1037 = vsub.s32 %v850, %v1036
      %v1038 = vrot.slane %v797, %v1037
      %v1039 = vlaneseq
      %v1040 = vshrl.u32 %v1039, 7
      %v1041 = vsub.s32 %v850, %v1040
      %v1042 = vrot.slane %v800, %v1041
      %v1043 = vlaneseq
      %v1044 = vshrl.u32 %v1043, 7
      %v1045 = vsub.s32 %v850, %v1044
      %v1046 = vrot.slane %v803, %v1045
      %v1047 = vlaneseq
      %v1048 = vshrl.u32 %v1047, 7
      %v1049 = vsub.s32 %v850, %v1048
      %v1050 = vrot.slane %v806, %v1049
      %v1051 = vlaneseq
      %v1052 = vshrl.u32 %v1051, 7
      %v1053 = vsub.s32 %v850, %v1052
      %v1054 = vrot.slane %v809, %v1053
      %v1055 = vlaneseq
      %v1056 = vshrl.u32 %v1055, 7
      %v1057 = vsub.s32 %v850, %v1056
      %v1058 = vrot.slane %v812, %v1057
      %v1059 = vlaneseq
      %v1060 = vshrl.u32 %v1059, 7
      %v1061 = vsub.s32 %v850, %v1060
      %v1062 = vrot.slane %v815, %v1061
      %v1063 = vlaneseq
      %v1064 = vshrl.u32 %v1063, 7
      %v1065 = vsub.s32 %v850, %v1064
      %v1066 = vrot.slane %v818, %v1065
      %v1067 = vlaneseq
      %v1068 = vshrl.u32 %v1067, 7
      %v1069 = vsub.s32 %v850, %v1068
      %v1070 = vrot.slane %v821, %v1069
      %v1071 = vlaneseq
      %v1072 = vshrl.u32 %v1071, 7
      %v1073 = vsub.s32 %v850, %v1072
      %v1074 = vrot.slane %v824, %v1073
      %v1075 = vlaneseq
      %v1076 = vshrl.u32 %v1075, 7
      %v1077 = vsub.s32 %v850, %v1076
      %v1078 = vrot.slane %v827, %v1077
      %v1079 = vlaneseq
      %v1080 = vshrl.u32 %v1079, 7
      %v1081 = vsub.s32 %v850, %v1080
      %v1082 = vrot.slane %v830, %v1081
      %v1083 = vlaneseq
      %v1084 = vshrl.u32 %v1083, 7
      %v1085 = vsub.s32 %v850, %v1084
      %v1086 = vrot.slane %v833, %v1085
      %v1087 = vlaneseq
      %v1088 = vshrl.u32 %v1087, 7
      %v1089 = vsub.s32 %v850, %v1088
      %v1090 = vrot.slane %v836, %v1089
      %v1091 = vlaneseq
      %v1092 = vshrl.u32 %v1091, 7
      %v1093 = vsub.s32 %v850, %v1092
      %v1094 = vrot.slane %v839, %v1093
      %v1095 = vlaneseq
      %v1096 = vshrl.u32 %v1095, 7
      %v1097 = vsub.s32 %v850, %v1096
      %v1098 = vrot.slane %v842, %v1097
      %v1099 = vlaneseq
      %v1100 = vshrl.u32 %v1099, 7
      %v1101 = vsub.s32 %v850, %v1100
      %v1102 = vrot.slane %v845, %v1101
      %v1103 = vlaneseq
      %v1104 = vshrl.u32 %v1103, 7
      %v1105 = vsub.s32 %v850, %v1104
      %v1106 = vrot.slane %v848, %v1105
      %vm1107 = vcmask 1041409
      %v1108 = vsel %vm1107, %v858, %v854
      %vm1109 = vcmask 1042434
      %v1110 = vsel %vm1109, %v862, %v1108
      %vm1111 = vcmask 1043459
      %v1112 = vsel %vm1111, %v866, %v1110
      %vm1113 = vcmask 1044484
      %v1114 = vsel %vm1113, %v870, %v1112
      %vm1115 = vcmask 1045509
      %v1116 = vsel %vm1115, %v874, %v1114
      %vm1117 = vcmask 1046534
      %v1118 = vsel %vm1117, %v878, %v1116
      %vm1119 = vcmask 1047559
      %v1120 = vsel %vm1119, %v882, %v1118
      %v1121 = vsel %vm1107, %v890, %v886
      %v1122 = vsel %vm1109, %v894, %v1121
      %v1123 = vsel %vm1111, %v898, %v1122
      %v1124 = vsel %vm1113, %v902, %v1123
      %v1125 = vsel %vm1115, %v906, %v1124
      %v1126 = vsel %vm1117, %v910, %v1125
      %v1127 = vsel %vm1119, %v914, %v1126
      %v1128 = vsel %vm1107, %v922, %v918
      %v1129 = vsel %vm1109, %v926, %v1128
      %v1130 = vsel %vm1111, %v930, %v1129
      %v1131 = vsel %vm1113, %v934, %v1130
      %v1132 = vsel %vm1115, %v938, %v1131
      %v1133 = vsel %vm1117, %v942, %v1132
      %v1134 = vsel %vm1119, %v946, %v1133
      %v1135 = vsel %vm1107, %v954, %v950
      %v1136 = vsel %vm1109, %v958, %v1135
      %v1137 = vsel %vm1111, %v962, %v1136
      %v1138 = vsel %vm1113, %v966, %v1137
      %v1139 = vsel %vm1115, %v970, %v1138
      %v1140 = vsel %vm1117, %v974, %v1139
      %v1141 = vsel %vm1119, %v978, %v1140
      %v1142 = vsel %vm1107, %v986, %v982
      %v1143 = vsel %vm1109, %v990, %v1142
      %v1144 = vsel %vm1111, %v994, %v1143
      %v1145 = vsel %vm1113, %v998, %v1144
      %v1146 = vsel %vm1115, %v1002, %v1145
      %v1147 = vsel %vm1117, %v1006, %v1146
      %v1148 = vsel %vm1119, %v1010, %v1147
      %v1149 = vsel %vm1107, %v1018, %v1014
      %v1150 = vsel %vm1109, %v1022, %v1149
      %v1151 = vsel %vm1111, %v1026, %v1150
      %v1152 = vsel %vm1113, %v1030, %v1151
      %v1153 = vsel %vm1115, %v1034, %v1152
      %v1154 = vsel %vm1117, %v1038, %v1153
      %v1155 = vsel %vm1119, %v1042, %v1154
      %v1156 = vsel %vm1107, %v1050, %v1046
      %v1157 = vsel %vm1109, %v1054, %v1156
      %v1158 = vsel %vm1111, %v1058, %v1157
      %v1159 = vsel %vm1113, %v1062, %v1158
      %v1160 = vsel %vm1115, %v1066, %v1159
      %v1161 = vsel %vm1117, %v1070, %v1160
      %v1162 = vsel %vm1119, %v1074, %v1161
      %v1163 = vsel %vm1107, %v1082, %v1078
      %v1164 = vsel %vm1109, %v1086, %v1163
      %v1165 = vsel %vm1111, %v1090, %v1164
      %v1166 = vsel %vm1113, %v1094, %v1165
      %v1167 = vsel %vm1115, %v1098, %v1166
      %v1168 = vsel %vm1117, %v1102, %v1167
      %v1169 = vsel %vm1119, %v1106, %v1168
      %vm1178 = vcmask 15360
      %v1179 = vsel %vm1178, %v1120, 0.0
      %1180 = vadd.xlane.f32.xlu0 %v1179
      %v1181 = vpop.xlane.xlu0 %1180
      %v1182 = vsel %vm1178, %v1127, 0.0
      %1183 = vadd.xlane.f32.xlu0 %v1182
      %v1184 = vpop.xlane.xlu0 %1183
      %v1185 = vsel %vm1178, %v1134, 0.0
      %1186 = vadd.xlane.f32.xlu0 %v1185
      %v1187 = vpop.xlane.xlu0 %1186
      %v1188 = vsel %vm1178, %v1141, 0.0
      %1189 = vadd.xlane.f32.xlu0 %v1188
      %v1190 = vpop.xlane.xlu0 %1189
      %v1191 = vsel %vm1178, %v1148, 0.0
      %1192 = vadd.xlane.f32.xlu0 %v1191
      %v1193 = vpop.xlane.xlu0 %1192
      %v1194 = vsel %vm1178, %v1155, 0.0
      %1195 = vadd.xlane.f32.xlu0 %v1194
      %v1196 = vpop.xlane.xlu0 %1195
      %v1197 = vsel %vm1178, %v1162, 0.0
      %1198 = vadd.xlane.f32.xlu0 %v1197
      %v1199 = vpop.xlane.xlu0 %1198
      %v1200 = vsel %vm1178, %v1169, 0.0
      %1201 = vadd.xlane.f32.xlu0 %v1200
      %v1202 = vpop.xlane.xlu0 %1201
      %v1203 = vld [vmem:[%s4] sm:$0x1]
      %v1205 = vlaneseq
      %v1206 = vshrl.u32 %v1205, 7
      %v1207 = vsub.s32 0, %v1206
      %v1208 = vrot.slane %v1203, %v1207
      %1210 = vbcast.lane.b32.xlu0 %v1208, 256
      %v1211 = vpop.permute.xlu0 %1210
      %s1213 = sor.u32 256, 8
      %1214 = vbcast.lane.b32.xlu0 %v1208, %s1213
      %v1215 = vpop.permute.xlu0 %1214
      %s1217 = sor.u32 256, 16
      %1218 = vbcast.lane.b32.xlu0 %v1208, %s1217
      %v1219 = vpop.permute.xlu0 %1218
      %s1221 = sor.u32 256, 24
      %1222 = vbcast.lane.b32.xlu0 %v1208, %s1221
      %v1223 = vpop.permute.xlu0 %1222
      %v1228 = vadd.f32 %v1181, %v1211
      %v1229 = vadd.f32 %v1184, %v1215
      %v1230 = vadd.f32 %v1187, %v1219
      %v1231 = vadd.f32 %v1190, %v1223
      %v1232 = vadd.f32 %v1193, %v1211
      %v1233 = vadd.f32 %v1196, %v1215
      %v1234 = vadd.f32 %v1199, %v1219
      %v1235 = vadd.f32 %v1202, %v1223
      %v1236 = vxor.u32 %v1228, 2147483648
      %v1237 = vxor.u32 %v1229, 2147483648
      %v1238 = vxor.u32 %v1230, 2147483648
      %v1239 = vxor.u32 %v1231, 2147483648
      %v1240 = vxor.u32 %v1232, 2147483648
      %v1241 = vxor.u32 %v1233, 2147483648
      %v1242 = vxor.u32 %v1234, 2147483648
      %v1243 = vxor.u32 %v1235, 2147483648
      %v1244 = vmul.f32 %v1236, 1.442695
      %v1245 = vpow.pop %v1244
      %v1246 = vmul.f32 %v1237, 1.442695
      %v1247 = vpow.pop %v1246
      %v1248 = vmul.f32 %v1238, 1.442695
      %v1249 = vpow.pop %v1248
      %v1250 = vmul.f32 %v1239, 1.442695
      %v1251 = vpow.pop %v1250
      %v1252 = vmul.f32 %v1240, 1.442695
      %v1253 = vpow.pop %v1252
      %v1254 = vmul.f32 %v1241, 1.442695
      %v1255 = vpow.pop %v1254
      %v1256 = vmul.f32 %v1242, 1.442695
      %v1257 = vpow.pop %v1256
      %v1258 = vmul.f32 %v1243, 1.442695
      %v1259 = vpow.pop %v1258
      %v1260 = vadd.f32 %v1245, 1.0
      %v1261 = vadd.f32 %v1247, 1.0
      %v1262 = vadd.f32 %v1249, 1.0
      %v1263 = vadd.f32 %v1251, 1.0
      %v1264 = vadd.f32 %v1253, 1.0
      %v1265 = vadd.f32 %v1255, 1.0
      %v1266 = vadd.f32 %v1257, 1.0
      %v1267 = vadd.f32 %v1259, 1.0
      %v1268 = vrcp.pop %v1260
      %v1269 = vmul.f32 1.0, %v1268
      %v1270 = vrcp.pop %v1261
      %v1271 = vmul.f32 1.0, %v1270
      %v1272 = vrcp.pop %v1262
      %v1273 = vmul.f32 1.0, %v1272
      %v1274 = vrcp.pop %v1263
      %v1275 = vmul.f32 1.0, %v1274
      %v1276 = vrcp.pop %v1264
      %v1277 = vmul.f32 1.0, %v1276
      %v1278 = vrcp.pop %v1265
      %v1279 = vmul.f32 1.0, %v1278
      %v1280 = vrcp.pop %v1266
      %v1281 = vmul.f32 1.0, %v1280
      %v1282 = vrcp.pop %v1267
      %v1283 = vmul.f32 1.0, %v1282
      %1292 = vset.pattern.permute.xlu0 0
      %1293 = vperm.xlu0 %1292, %v1269
      %v1294 = vpop.permute.xlu0 %1293
      %1295 = vset.pattern.permute.xlu0 0
      %1296 = vperm.xlu0 %1295, %v1271
      %v1297 = vpop.permute.xlu0 %1296
      %1298 = vset.pattern.permute.xlu0 0
      %1299 = vperm.xlu0 %1298, %v1273
      %v1300 = vpop.permute.xlu0 %1299
      %1301 = vset.pattern.permute.xlu0 0
      %1302 = vperm.xlu0 %1301, %v1275
      %v1303 = vpop.permute.xlu0 %1302
      %1304 = vset.pattern.permute.xlu0 0
      %1305 = vperm.xlu0 %1304, %v1277
      %v1306 = vpop.permute.xlu0 %1305
      %1307 = vset.pattern.permute.xlu0 0
      %1308 = vperm.xlu0 %1307, %v1279
      %v1309 = vpop.permute.xlu0 %1308
      %1310 = vset.pattern.permute.xlu0 0
      %1311 = vperm.xlu0 %1310, %v1281
      %v1312 = vpop.permute.xlu0 %1311
      %1313 = vset.pattern.permute.xlu0 0
      %1314 = vperm.xlu0 %1313, %v1283
      %v1315 = vpop.permute.xlu0 %1314
      %v1316 = vlaneseq
      %v1317 = vshrl.u32 %v1316, 7
      %v1318 = vsub.s32 %v850, %v1317
      %v1319 = vrot.slane %v1294, %v1318
      %v1320 = vadd.s32 %v850, 4294967288
      %v1321 = vlaneseq
      %v1322 = vshrl.u32 %v1321, 7
      %v1323 = vsub.s32 %v1320, %v1322
      %v1324 = vrot.slane %v1297, %v1323
      %vm1325 = vcmask 130112
      %v1326 = vsel %vm1325, %v1324, %v1319
      %v1327 = vadd.s32 %v850, 4294967280
      %v1328 = vlaneseq
      %v1329 = vshrl.u32 %v1328, 7
      %v1330 = vsub.s32 %v1327, %v1329
      %v1331 = vrot.slane %v1300, %v1330
      %vm1332 = vcmask 195712
      %v1333 = vsel %vm1332, %v1331, %v1326
      %v1334 = vadd.s32 %v850, 4294967272
      %v1335 = vlaneseq
      %v1336 = vshrl.u32 %v1335, 7
      %v1337 = vsub.s32 %v1334, %v1336
      %v1338 = vrot.slane %v1303, %v1337
      %vm1339 = vcmask 261312
      %v1340 = vsel %vm1339, %v1338, %v1333
      %v1341 = vlaneseq
      %v1342 = vshrl.u32 %v1341, 7
      %v1343 = vsub.s32 %v850, %v1342
      %v1344 = vrot.slane %v1306, %v1343
      %v1345 = vlaneseq
      %v1346 = vshrl.u32 %v1345, 7
      %v1347 = vsub.s32 %v1320, %v1346
      %v1348 = vrot.slane %v1309, %v1347
      %v1349 = vsel %vm1325, %v1348, %v1344
      %v1350 = vlaneseq
      %v1351 = vshrl.u32 %v1350, 7
      %v1352 = vsub.s32 %v1327, %v1351
      %v1353 = vrot.slane %v1312, %v1352
      %v1354 = vsel %vm1332, %v1353, %v1349
      %v1355 = vlaneseq
      %v1356 = vshrl.u32 %v1355, 7
      %v1357 = vsub.s32 %v1334, %v1356
      %v1358 = vrot.slane %v1315, %v1357
      %v1359 = vsel %vm1339, %v1358, %v1354
      %v1360 = vsel %vm1107, %v1359, %v1340
      %1362 = vst.msk [vmem:[#allocation6] sm:$0x3] %vm244, %v1360
    $region37: #{tpu_custom_call.1} parent=1 // pred_fallthru
      _
    // Predicated region
    $region38: #{tpu_custom_call.1} parent=1 // pred_check
      _
    $region39: #{tpu_custom_call.1} parent=1 // pred_check_branch
      %1364 = sbr.rel (0) target = $region41
    $region40: #{tpu_custom_call.1} parent=1 // pred_region
      %s1366 = ssub.s32 32, 32
      %1367 = vsyncadd [#allocation5], %s1366
      %s1369 = sshll.u32 [#allocation6], 4
      %s1370 = int_to_ptr.vmem [resolvable:$true] %s1369
      %1372 = dma.vmem_to_hbm [thread:$0]  %s1370, 32, %s5, [#allocation5]
    $region41: #{tpu_custom_call.1} parent=1 // pred_fallthru
      _
    // Predicated region
    $region42: #{tpu_custom_call.1} parent=1 // pred_check
      _
    $region43: #{tpu_custom_call.1} parent=1 // pred_check_branch
      %1374 = sbr.rel (0) target = $region45
    $region44: #{tpu_custom_call.1} parent=1 // pred_region
      %1375 = dma.done [#allocation5], 32
    $region45: #{tpu_custom_call.1} parent=1 // pred_fallthru
      _
    %1376 = vsyncpa [#allocation4], 1
    %1377 = vsyncpa [#allocation5], 1

</llo_original>
